<compile_context>
chip_gen: v5e
topology: v5e:2x2
jax: 0.10.0
libtpu: 0.0.40
codegen_flags: <defaults>
</compile_context>

<pallas_src>
import functools

import jax
import jax.numpy as jnp
from jax.experimental import pallas as pl
from jax.experimental.pallas import tpu as pltpu


def _round_up(x, m):
    return (x + m - 1) // m * m


def _focal_loss_kernel(preds_ref, labels_ref, out_ref, *, alpha, gamma, num_classes):
    """One grid step: an (8, TQ) slab of rows, classes on a small leading dim."""
    C = num_classes

    x = preds_ref[...].astype(jnp.float32)      # (C, 1, 8, TQ)
    labels = labels_ref[...][0]                 # (8, TQ) int32

    # Per-class logit slabs: leading-dim slices of the tiled buffer (free views).
    rows = [x[c, 0] for c in range(C)]          # each (8, TQ), sublane-packed

    # Row-wise max over the (small, compile-time) class axis — pure VPU.
    m = rows[0]
    for r in rows[1:]:
        m = jnp.maximum(m, r)

    # Softmax denominator; keep the per-class exponentials so the target-class
    # probability can be selected instead of recomputed (saves one EUP exp/row).
    exps = [jnp.exp(r - m) for r in rows]
    s = exps[0]
    for e in exps[1:]:
        s = s + e

    # Target-class logit / exp / alpha weight via C full-width selects
    # (no dynamic gather; padded rows carry label == -1 and never match).
    x_t = jnp.zeros_like(m)
    e_t = jnp.zeros_like(m)
    a_t = jnp.zeros_like(m)
    for c in range(C):
        mask = labels == c
        x_t = jnp.where(mask, rows[c], x_t)
        e_t = jnp.where(mask, exps[c], e_t)
        a_t = jnp.where(mask, jnp.float32(alpha[c]), a_t)

    logpt = x_t - m - jnp.log(s)                # log-softmax at target class only
    pt = e_t / s                                # reuse exp(x_t - m); no extra exp

    one_minus = jnp.float32(1.0) - pt
    # (1 - pt) ** gamma: repeated multiply for small integer gamma (avoids the
    # exp(gamma*log(.)) lowering of jnp.power and the pow(0, gamma) edge case).
    g = float(gamma)
    if g.is_integer() and 0 <= int(g) <= 8:
        gi = int(g)
        if gi == 0:
            focal = jnp.ones_like(one_minus)
        else:
            focal = one_minus
            for _ in range(gi - 1):
                focal = focal * one_minus
    else:
        focal = jnp.power(one_minus, jnp.float32(g))

    loss = -a_t * focal * logpt                 # exactly 0 on padded rows (a_t == 0)

    # One cross-lane/sublane reduce per (large) tile; this block's private
    # output tile holds the block partial sum (wrapper reads [:, 0, 0]).
    out_ref[...] = jnp.full((1, 8, 128), jnp.sum(loss), dtype=jnp.float32)


def focal_loss3(preds, labels, *, alpha=0.25, gamma=2.0, num_classes=3,
                size_average=True, row_tile=131072):
    """JAX/Pallas equivalent of FocalLoss3.forward.

    preds:  [B, N, C] or [B, C] float (any float dtype; cast to f32 in-kernel)
    labels: [B, N]    or [B]    int
    Returns a scalar (float32).
    """
    # --- class-weight setup (matches FocalLoss3.__init__); baked as constants ---
    if isinstance(alpha, (list, tuple)):
        assert len(alpha) == num_classes
        alpha_list = tuple(float(a) for a in alpha)
    else:
        assert alpha < 1
        alpha_list = (float(alpha),) + (1.0 - float(alpha),) * (num_classes - 1)

    C = preds.shape[-1]
    assert C == num_classes

    preds2 = preds.reshape(-1, C)
    M = preds2.shape[0]

    # --- row-tile selection ---------------------------------------------------
    #  * multiple of 1024 (= 8 sublanes x 128 lanes)
    #  * aim for ~8 grid steps so v7x's two TensorCores both get work
    #  * cap by `row_tile` and by a VMEM budget safe on v7x (64 MiB physical /
    #    32 MiB scoped): double-buffered preds + labels + ~12 f32 temps per row.
    preds_bytes = jnp.dtype(preds.dtype).itemsize
    per_row_vmem = 2 * C * preds_bytes + 2 * 4 + 12 * 4
    vmem_budget = 24 * 1024 * 1024
    tm_cap = max(1024, (vmem_budget // per_row_vmem) // 1024 * 1024)
    tm = _round_up(-(-M // 8), 1024)
    tm = min(tm, _round_up(int(row_tile), 1024), tm_cap)
    tm = max(tm, 1024)
    tq = tm // 8
    M_pad = _round_up(M, tm)
    G = M_pad // tm

    # --- layout: one transpose copy; pad + reshape fuse into it ----------------
    preds_t = preds2.T                                        # [C, M]
    if M_pad != M:
        preds_t = jnp.pad(preds_t, ((0, 0), (0, M_pad - M)))
    preds_t = preds_t.reshape(C, G, 8, tq)                    # sublane-packed slabs

    labels_flat = labels.reshape(-1).astype(jnp.int32)
    if M_pad != M:
        labels_flat = jnp.pad(labels_flat, (0, M_pad - M), constant_values=-1)
    labels_r = labels_flat.reshape(G, 8, tq)

    kernel = functools.partial(_focal_loss_kernel, alpha=alpha_list,
                               gamma=float(gamma), num_classes=C)

    vmem_limit = int(min(32 * 1024 * 1024,
                         max(16 * 1024 * 1024, 2 * per_row_vmem * tm)))

    partials = pl.pallas_call(
        kernel,
        out_shape=jax.ShapeDtypeStruct((G, 8, 128), jnp.float32),
        grid_spec=pltpu.PrefetchScalarGridSpec(
            num_scalar_prefetch=0,
            grid=(G,),
            in_specs=[
                # logits tile: classes leading, rows as a full (8, TQ) slab
                pl.BlockSpec((C, 1, 8, tq), lambda i: (0, i, 0, 0)),
                # labels tile: (8, TQ) slab of int32
                pl.BlockSpec((1, 8, tq), lambda i: (i, 0, 0)),
            ],
            out_specs=pl.BlockSpec((1, 8, 128), lambda i: (i, 0, 0)),
        ),
        compiler_params=pltpu.CompilerParams(
            # each grid step owns its output block -> safe to shard across
            # TensorCores on v7x; no measurable effect on single-TC chips.
            dimension_semantics=("parallel",),
            vmem_limit_bytes=vmem_limit,
        ),
    )(preds_t, labels_r)

    # Every element of a partial block holds the same per-block sum.
    total = jnp.sum(partials[:, 0, 0])
    if size_average:
        return total / jnp.float32(M)        # divide by TRUE row count, not M_pad
    return total


def _reference_focal_loss(preds, labels, *, alpha=0.25, gamma=2.0,
                          num_classes=3, size_average=True):
    """Pure-JAX reference mirroring the PyTorch forward."""
    if isinstance(alpha, (list, tuple)):
        alpha_vec = jnp.asarray(alpha, dtype=jnp.float32)
    else:
        alpha_vec = jnp.concatenate([
            jnp.full((1,), alpha, dtype=jnp.float32),
            jnp.full((num_classes - 1,), 1.0 - alpha, dtype=jnp.float32),
        ])
    p2 = preds.reshape(-1, preds.shape[-1]).astype(jnp.float32)
    l2 = labels.reshape(-1).astype(jnp.int32)
    sm = jax.nn.softmax(p2, axis=1)
    logsm = jnp.log(sm)
    pt = jnp.take_along_axis(sm, l2[:, None], axis=1)[:, 0]
    logpt = jnp.take_along_axis(logsm, l2[:, None], axis=1)[:, 0]
    a = alpha_vec[l2]
    loss = -a * jnp.power(1.0 - pt, gamma) * logpt
    return jnp.mean(loss) if size_average else jnp.sum(loss)


if __name__ == "__main__":
    key = jax.random.PRNGKey(0)
    k1, k2 = jax.random.split(key)

    B, N, C = 2, 8, 3  # detection-style input: [B, N, C] preds, [B, N] labels
    preds = jax.random.normal(k1, (B, N, C), dtype=jnp.float32)
    labels = jax.random.randint(k2, (B, N), 0, C, dtype=jnp.int32)

    # size_average=True (mean)
    loss_mean = focal_loss3(preds, labels, alpha=0.25, gamma=2.0,
                            num_classes=C, size_average=True)
    loss_mean = jax.block_until_ready(loss_mean)
    ref_mean = _reference_focal_loss(preds, labels, alpha=0.25, gamma=2.0,
                                     num_classes=C, size_average=True)
    assert jnp.allclose(loss_mean, ref_mean, rtol=1e-5, atol=1e-6), (loss_mean, ref_mean)

    # size_average=False (sum), with per-class alpha list
    loss_sum = focal_loss3(preds, labels, alpha=[0.2, 0.3, 0.5], gamma=2.0,
                           num_classes=C, size_average=False)
    loss_sum = jax.block_until_ready(loss_sum)
    ref_sum = _reference_focal_loss(preds, labels, alpha=[0.2, 0.3, 0.5], gamma=2.0,
                                    num_classes=C, size_average=False)
    assert jnp.allclose(loss_sum, ref_sum, rtol=1e-5, atol=1e-5), (loss_sum, ref_sum)

    print("KERNEL_OK")
</pallas_src>

<mosaic_0001>
module attributes {stable_mosaic.version = 11 : i64} {
  func.func @_focal_loss_kernel(%arg0: i32, %arg1: memref<3x1x8x128xf32, #tpu.memory_space<vmem>>, %arg2: memref<1x8x128xi32, #tpu.memory_space<vmem>>, %arg3: memref<1x8x128xf32, #tpu.memory_space<vmem>>) attributes {dimension_semantics = [#tpu.dimension_semantics<parallel>], iteration_bounds = array<i64: 1>, scalar_prefetch = 0 : i64, scratch_operands = 0 : i64, tpu.core_type = #tpu.core_type<tc>, window_params = [{transform_indices = @transform_0, window_bounds = array<i64: 3, 1, 8, 128>}, {transform_indices = @transform_1, window_bounds = array<i64: 1, 8, 128>}, {transform_indices = @transform_2, window_bounds = array<i64: 1, 8, 128>}]} {
    %c0 = arith.constant 0 : index
    %c0_0 = arith.constant 0 : index
    %c0_1 = arith.constant 0 : index
    %c0_2 = arith.constant 0 : index
    %0 = vector.load %arg1[%c0, %c0_0, %c0_1, %c0_2] : memref<3x1x8x128xf32, #tpu.memory_space<vmem>>, vector<3x1x8x128xf32>
    %c0_3 = arith.constant 0 : index
    %c0_4 = arith.constant 0 : index
    %c0_5 = arith.constant 0 : index
    %1 = vector.load %arg2[%c0_3, %c0_4, %c0_5] : memref<1x8x128xi32, #tpu.memory_space<vmem>>, vector<1x8x128xi32>
    %2 = vector.shape_cast %1 : vector<1x8x128xi32> to vector<8x128xi32>
    %3 = vector.extract_strided_slice %0 {offsets = [0, 0, 0, 0], sizes = [1, 1, 8, 128], strides = [1, 1, 1, 1]} : vector<3x1x8x128xf32> to vector<1x1x8x128xf32>
    %4 = vector.shape_cast %3 : vector<1x1x8x128xf32> to vector<8x128xf32>
    %5 = vector.extract_strided_slice %0 {offsets = [1, 0, 0, 0], sizes = [1, 1, 8, 128], strides = [1, 1, 1, 1]} : vector<3x1x8x128xf32> to vector<1x1x8x128xf32>
    %6 = vector.shape_cast %5 : vector<1x1x8x128xf32> to vector<8x128xf32>
    %7 = vector.extract_strided_slice %0 {offsets = [2, 0, 0, 0], sizes = [1, 1, 8, 128], strides = [1, 1, 1, 1]} : vector<3x1x8x128xf32> to vector<1x1x8x128xf32>
    %8 = vector.shape_cast %7 : vector<1x1x8x128xf32> to vector<8x128xf32>
    %9 = arith.maximumf %4, %6 : vector<8x128xf32>
    %10 = arith.maximumf %9, %8 : vector<8x128xf32>
    %11 = arith.subf %4, %10 : vector<8x128xf32>
    %12 = math.exp %11 : vector<8x128xf32>
    %13 = arith.subf %6, %10 : vector<8x128xf32>
    %14 = math.exp %13 : vector<8x128xf32>
    %15 = arith.subf %8, %10 : vector<8x128xf32>
    %16 = math.exp %15 : vector<8x128xf32>
    %17 = arith.addf %12, %14 : vector<8x128xf32>
    %18 = arith.addf %17, %16 : vector<8x128xf32>
    %cst = arith.constant 0.000000e+00 : f32
    %19 = vector.broadcast %cst : f32 to vector<8x128xf32>
    %cst_6 = arith.constant 0.000000e+00 : f32
    %20 = vector.broadcast %cst_6 : f32 to vector<8x128xf32>
    %cst_7 = arith.constant 0.000000e+00 : f32
    %21 = vector.broadcast %cst_7 : f32 to vector<8x128xf32>
    %c0_i32 = arith.constant 0 : i32
    %22 = vector.broadcast %c0_i32 : i32 to vector<8x128xi32>
    %23 = arith.cmpi eq, %2, %22 : vector<8x128xi32>
    %24 = arith.select %23, %4, %19 : vector<8x128xi1>, vector<8x128xf32>
    %25 = arith.select %23, %12, %20 : vector<8x128xi1>, vector<8x128xf32>
    %cst_8 = arith.constant 2.500000e-01 : f32
    %26 = vector.broadcast %cst_8 : f32 to vector<8x128xf32>
    %27 = arith.select %23, %26, %21 : vector<8x128xi1>, vector<8x128xf32>
    %c1_i32 = arith.constant 1 : i32
    %28 = vector.broadcast %c1_i32 : i32 to vector<8x128xi32>
    %29 = arith.cmpi eq, %2, %28 : vector<8x128xi32>
    %30 = arith.select %29, %6, %24 : vector<8x128xi1>, vector<8x128xf32>
    %31 = arith.select %29, %14, %25 : vector<8x128xi1>, vector<8x128xf32>
    %cst_9 = arith.constant 7.500000e-01 : f32
    %32 = vector.broadcast %cst_9 : f32 to vector<8x128xf32>
    %33 = arith.select %29, %32, %27 : vector<8x128xi1>, vector<8x128xf32>
    %c2_i32 = arith.constant 2 : i32
    %34 = vector.broadcast %c2_i32 : i32 to vector<8x128xi32>
    %35 = arith.cmpi eq, %2, %34 : vector<8x128xi32>
    %36 = arith.select %35, %8, %30 : vector<8x128xi1>, vector<8x128xf32>
    %37 = arith.select %35, %16, %31 : vector<8x128xi1>, vector<8x128xf32>
    %cst_10 = arith.constant 7.500000e-01 : f32
    %38 = vector.broadcast %cst_10 : f32 to vector<8x128xf32>
    %39 = arith.select %35, %38, %33 : vector<8x128xi1>, vector<8x128xf32>
    %40 = arith.subf %36, %10 : vector<8x128xf32>
    %41 = math.log %18 : vector<8x128xf32>
    %42 = arith.subf %40, %41 : vector<8x128xf32>
    %43 = arith.divf %37, %18 : vector<8x128xf32>
    %cst_11 = arith.constant 1.000000e+00 : f32
    %44 = vector.broadcast %cst_11 : f32 to vector<8x128xf32>
    %45 = arith.subf %44, %43 : vector<8x128xf32>
    %46 = arith.mulf %45, %45 : vector<8x128xf32>
    %cst_12 = arith.constant 0.000000e+00 : f32
    %47 = vector.broadcast %cst_12 : f32 to vector<8x128xf32>
    %48 = arith.subf %47, %39 : vector<8x128xf32>
    %49 = arith.mulf %48, %46 : vector<8x128xf32>
    %50 = arith.mulf %49, %42 : vector<8x128xf32>
    %51 = vector.shape_cast %50 : vector<8x128xf32> to vector<1x8x128xf32>
    %cst_13 = arith.constant dense<0.000000e+00> : vector<1xf32>
    %52 = vector.multi_reduction <add>, %51, %cst_13 [1, 2] : vector<1x8x128xf32> to vector<1xf32>
    %53 = vector.shape_cast %52 : vector<1xf32> to vector<1x1x1xf32>
    %54 = vector.extract %53[0, 0, 0] : f32 from vector<1x1x1xf32>
    %55 = vector.broadcast %54 : f32 to vector<1x8x128xf32>
    %c0_14 = arith.constant 0 : index
    %c0_15 = arith.constant 0 : index
    %c0_16 = arith.constant 0 : index
    %56 = vector.load %arg3[%c0_14, %c0_15, %c0_16] : memref<1x8x128xf32, #tpu.memory_space<vmem>>, vector<1x8x128xf32>
    tpu.vector_store %arg3[%c0_14, %c0_15, %c0_16], %55 {strides = array<i32>} : memref<1x8x128xf32, #tpu.memory_space<vmem>>, vector<1x8x128xf32>,
    return
  }
  func.func @transform_0(%arg0: i32) -> (i32, i32, i32, i32) {
    %c0_i32 = arith.constant 0 : i32
    %c0_i32_0 = arith.constant 0 : i32
    %c0_i32_1 = arith.constant 0 : i32
    %c0_i32_2 = arith.constant 0 : i32
    return %c0_i32, %arg0, %c0_i32_0, %c0_i32_1 : i32, i32, i32, i32
  }
  func.func @transform_1(%arg0: i32) -> (i32, i32, i32) {
    %c0_i32 = arith.constant 0 : i32
    %c0_i32_0 = arith.constant 0 : i32
    %c0_i32_1 = arith.constant 0 : i32
    return %arg0, %c0_i32, %c0_i32_0 : i32, i32, i32
  }
  func.func @transform_2(%arg0: i32) -> (i32, i32, i32) {
    %c0_i32 = arith.constant 0 : i32
    %c0_i32_0 = arith.constant 0 : i32
    %c0_i32_1 = arith.constant 0 : i32
    return %arg0, %c0_i32, %c0_i32_0 : i32, i32, i32
  }
}

</mosaic_0001>

<llo_original>
// kernel: tpu_custom_call.1
$region0: #{tpu_custom_call.1}
  #allocation0 [shape = 'u32[]', space=smem, size = 0x4, offset = 0x4, fixed_abs, tag = 'smem constant byte address 0x4 - core index']
  #allocation1 [shape = 'u32[72,128]{1,0:T(1,128)}', space=vmem, size = 0x9000, scoped, tag = 'internal scratch']
  %s0 = inlined_call_operand.hbm [shape: f32[3,1,8,128], index: 0, kind: input, shape index: {}]
  %s1 = inlined_call_operand.hbm [shape: s32[1,8,128], index: 1, kind: input, shape index: {}]
  %s2 = inlined_call_operand.hbm [shape: f32[1,8,128], index: 2, kind: output, shape index: {}]
  %s3 = sld [smem:[#allocation0]]
  $region26: #{tpu_custom_call.1} parent=0
    _
  %s5 = ssub.s32 1, %s3
  %s6 = scalar_select 0, %s5, %s3
  $region1: #{tpu_custom_call.1} parent=0
    #allocation2 [shape = 'u8[12288]{0}', space=vmem, size = 0x3000, scoped, tag = 'input window, operand 0, single buffered']
    #allocation3 [shape = 's32[1]{0}', space=sflag, size = 0x4, scoped, tag = 'scoped memory for tpu_custom_call.1']
    #allocation4 [shape = 's32[1]{0}', space=sflag, size = 0x4, scoped, tag = 'scoped memory for tpu_custom_call.1']
    #allocation5 [shape = 'u8[4096]{0}', space=vmem, size = 0x1000, scoped, tag = 'input window, operand 1, single buffered']
    #allocation6 [shape = 's32[1]{0}', space=sflag, size = 0x4, scoped, tag = 'scoped memory for tpu_custom_call.1']
    #allocation7 [shape = 'u8[4096]{0}', space=vmem, size = 0x1000, scoped, tag = 'output window, operand 0, single buffered']
    %7 = vsyncpa [#allocation3], 0
    %8 = vsyncpa [#allocation6], 0
    %9 = vsyncpa [#allocation4], 0
    // Predicated region
    $region2: #{tpu_custom_call.1} parent=1 // pred_check
      _
    $region3: #{tpu_custom_call.1} parent=1 // pred_check_branch
      %11 = sbr.rel (0) target = $region5
    $region4: #{tpu_custom_call.1} parent=1 // pred_region
      %13 = vsyncadd [#allocation3], 0
      %s14 = sshll.u32 %s0, 4
      %s15 = int_to_ptr.hbm [resolvable:$true] %s14
      %s16 = sshll.u32 [#allocation2], 4
      %s17 = int_to_ptr.vmem [resolvable:$true] %s16
      %22 = dma.hbm_to_vmem [thread:$0]  %s15, 384, %s17, [#allocation3], 128, 128, 8
    $region5: #{tpu_custom_call.1} parent=1 // pred_fallthru
      _
    // Predicated region
    $region6: #{tpu_custom_call.1} parent=1 // pred_check
      _
    $region7: #{tpu_custom_call.1} parent=1 // pred_check_branch
      %24 = sbr.rel (0) target = $region9
    $region8: #{tpu_custom_call.1} parent=1 // pred_region
      %26 = vsyncadd [#allocation6], 0
      %s28 = sshll.u32 %s1, 4
      %s29 = int_to_ptr.hbm [resolvable:$true] %s28
      %s30 = sshll.u32 [#allocation5], 4
      %s31 = int_to_ptr.vmem [resolvable:$true] %s30
      %33 = dma.hbm_to_vmem [thread:$0]  %s29, 128, %s31, [#allocation6]
    $region9: #{tpu_custom_call.1} parent=1 // pred_fallthru
      _
    // Predicated region
    $region10: #{tpu_custom_call.1} parent=1 // pred_check
      _
    $region11: #{tpu_custom_call.1} parent=1 // pred_check_branch
      %35 = sbr.rel (0) target = $region13
    $region12: #{tpu_custom_call.1} parent=1 // pred_region
      %37 = dma.done [#allocation3], 384
    $region13: #{tpu_custom_call.1} parent=1 // pred_fallthru
      _
    // Predicated region
    $region14: #{tpu_custom_call.1} parent=1 // pred_check
      _
    $region15: #{tpu_custom_call.1} parent=1 // pred_check_branch
      %39 = sbr.rel (0) target = $region17
    $region16: #{tpu_custom_call.1} parent=1 // pred_region
      %41 = dma.done [#allocation6], 128
    $region17: #{tpu_custom_call.1} parent=1 // pred_fallthru
      _
    %v42 = vld [vmem:[#allocation2] sm:$0xff]
    %v43 = vld [vmem:[#allocation2 + $0x8] sm:$0xff]
    %v44 = vld [vmem:[#allocation2 + $0x10] sm:$0xff]
    %v45 = vld [vmem:[#allocation5] sm:$0xff]
    %v46 = vmax.f32 %v42, %v43
    %v47 = vmax.f32 %v46, %v44
    %v48 = vsub.f32 %v42, %v47
    %v49 = vmul.f32 %v48, 1.442695
    %v50 = vpow.pop %v49
    %v51 = vsub.f32 %v43, %v47
    %v52 = vmul.f32 %v51, 1.442695
    %v53 = vpow.pop %v52
    %v54 = vsub.f32 %v44, %v47
    %v55 = vmul.f32 %v54, 1.442695
    %v56 = vpow.pop %v55
    %v57 = vadd.f32 %v50, %v53
    %v58 = vadd.f32 %v57, %v56
    %vm59 = vcmp.eq.s32.totalorder %v45, 0
    %v60 = vsel %vm59, %v42, 0.0
    %v61 = vsel %vm59, %v50, 0.0
    %v62 = vsel %vm59, 0.25, 0.0
    %vm63 = vcmp.eq.s32.totalorder %v45, 1
    %v64 = vsel %vm63, %v43, %v60
    %v65 = vsel %vm63, %v53, %v61
    %v66 = vsel %vm63, 0.75, %v62
    %vm67 = vcmp.eq.s32.totalorder %v45, 2
    %v68 = vsel %vm67, %v44, %v64
    %v69 = vsel %vm67, %v56, %v65
    %v70 = vsel %vm67, 0.75, %v66
    %v71 = vsub.f32 %v68, %v47
    %v72 = vlog2.pop %v58
    %v73 = vmul.f32 %v72, 0.6931472
    %v74 = vsub.f32 %v71, %v73
    %v75 = vrcp.pop %v58
    %v76 = vmul.f32 %v58, %v75
    %v77 = vsub.f32 1.0, %v76
    %v78 = vmul.f32 %v75, %v77
    %v79 = vadd.f32 %v75, %v78
    %vm80 = vweird.f32 %v58
    %vm81 = vweird.f32 %v75
    %vm82 = vmor %vm80, %vm81
    %v83 = vsel %vm82, %v75, %v79
    %v84 = vand.u32 2147483647, %v58
    %vm85 = vcmp.eq.f32.partialorder %v84, 8.507059e+37
    %v86 = vand.u32 %v58, 2147483648
    %v87 = vor.u32 1.1754944e-38, %v86
    %v88 = vsel %vm85, %v87, %v83
    %v89 = vmul.f32 %v69, %v88
    %v90 = vsub.f32 1.0, %v89
    %v91 = vmul.f32 %v90, %v90
    %v92 = vsub.f32 0.0, %v70
    %v93 = vmul.f32 %v92, %v91
    %v94 = vmul.f32 %v93, %v74
    %95 = vadd.xlane.f32.xlu0 %v94
    %v96 = vpop.xlane.xlu0 %95
    %v97 = vrot.slane %v96, 4
    %v98 = vadd.f32 %v96, %v97
    %v99 = vrot.slane %v98, 2
    %v100 = vadd.f32 %v98, %v99
    %v101 = vrot.slane %v100, 1
    %v102 = vadd.f32 %v100, %v101
    %s103 = vtos %v102
    %v104 = vstv %s103
    %105 = vst [vmem:[#allocation7] sm:$0xff] %v104
    // Predicated region
    $region18: #{tpu_custom_call.1} parent=1 // pred_check
      _
    $region19: #{tpu_custom_call.1} parent=1 // pred_check_branch
      %107 = sbr.rel (0) target = $region21
    $region20: #{tpu_custom_call.1} parent=1 // pred_region
      %109 = vsyncadd [#allocation4], 0
      %s111 = sshll.u32 [#allocation7], 4
      %s112 = int_to_ptr.vmem [resolvable:$true] %s111
      %s113 = sshll.u32 %s2, 4
      %s114 = int_to_ptr.hbm [resolvable:$true] %s113
      %116 = dma.vmem_to_hbm [thread:$0]  %s112, 128, %s114, [#allocation4]
    $region21: #{tpu_custom_call.1} parent=1 // pred_fallthru
      _
    // Predicated region
    $region22: #{tpu_custom_call.1} parent=1 // pred_check
      _
    $region23: #{tpu_custom_call.1} parent=1 // pred_check_branch
      %118 = sbr.rel (0) target = $region25
    $region24: #{tpu_custom_call.1} parent=1 // pred_region
      %120 = dma.done [#allocation4], 128
    $region25: #{tpu_custom_call.1} parent=1 // pred_fallthru
      _
    %121 = vsyncpa [#allocation3], 1
    %122 = vsyncpa [#allocation6], 1
    %123 = vsyncpa [#allocation4], 1

</llo_original>
